<compile_context>
chip_gen: v7x
topology: tpu7x:2x2x1
jax: 0.10.0
libtpu: 0.0.40
codegen_flags: <defaults>
</compile_context>

<pallas_src>
import jax
import jax.numpy as jnp
from jax.experimental import pallas as pl
from jax.experimental.pallas import tpu as pltpu


def _round_up8(x):
    return max(8, -(-x // 8) * 8)


def _num_tensorcores_per_chip():
    """2 on v7x (megacore grid sharding), 1 on v5e/v6e."""
    try:
        kind = jax.devices()[0].device_kind.lower()
    except Exception:
        return 1
    return 2 if "v7" in kind else 1


def _make_kernel(num_classes, mxu_dtype, precision):
    def kernel(x_ref, w1_ref, b1_ref, w2_ref, b2_ref, o_ref):
        # Dropout = identity (inference).  Cast on the VPU inside the kernel so
        # the feature tile is DMA'd once in its native dtype (no wrapper pass).
        x = x_ref[...].astype(mxu_dtype)
        h = jnp.dot(x, w1_ref[...],
                    preferred_element_type=jnp.float32, precision=precision)
        h = jnp.tanh(h + b1_ref[...])
        logits = jnp.dot(h.astype(mxu_dtype), w2_ref[...],
                         preferred_element_type=jnp.float32,
                         precision=precision) + b2_ref[...]
        # Store only the true class columns: the 128-lane MXU padding of w2/b2
        # never reaches HBM.
        o_ref[...] = logits[:, :num_classes]
    return kernel


def _choose_block_b(B, in_size, hidden, n_pad, num_classes, x_bytes, num_cores):
    """Batch tile sized from a conservative VMEM budget (fits every TPU gen)."""
    # Per-row footprint: double-buffered feature + output tiles, plus the f32
    # hidden activation and padded-logit temporaries (single copy each).
    per_row = (2 * in_size * x_bytes
               + 2 * num_classes * 4
               + (hidden + n_pad) * 4)
    budget = 20 * 1024 * 1024          # well under v7x's 64 MiB physical VMEM
    bb = max(8, min(budget // per_row, 8192))
    bb = min(bb, _round_up8(B))
    bb = max(8, (bb // 8) * 8)
    if num_cores >= 2 and B >= 16:
        # v7x only: make the grid an even number of steps so both TensorCores
        # get balanced work.  Single-core chips keep one big block.
        steps = -(-B // bb)
        if steps % 2 == 1:
            steps += 1
            bb = _round_up8(-(-B // steps))
    return bb


def prediction_classification(features, w1, b1, w2, b2, *, block_b=None,
                              use_bf16_matmul=True):
    """Fused classification head.

    features: [B, input_size]   (any float dtype; cast in-kernel)
    w1: [input_size, hidden]    b1: [hidden] or [1, hidden]
    w2: [hidden, num_classes]   b2: [num_classes] or [1, num_classes]
    returns: [B, num_classes] float32

    use_bf16_matmul=True feeds both matmuls in bf16 (f32 accumulation);
    set False for exact float32 semantics matching the PyTorch module.
    """
    # TODO(synk): training-mode Dropout is not implemented (identity / eval only).
    B, in_size = features.shape
    hidden = w1.shape[1]
    num_classes = w2.shape[1]

    if use_bf16_matmul:
        mxu_dtype = jnp.bfloat16
        precision = None
    else:
        mxu_dtype = jnp.float32
        precision = jax.lax.Precision.HIGHEST

    # Weights/biases are tiny: cast/pad them in the wrapper.  Features are fed
    # in their native dtype and cast in-kernel.
    w1c = w1.astype(mxu_dtype)
    b1c = b1.astype(jnp.float32).reshape(1, hidden)

    # Pad the class axis of w2/b2 to a lane-dense multiple of 128 for the MXU;
    # the padding is sliced away inside the kernel, never written to HBM.
    n_pad = ((num_classes + 127) // 128) * 128
    pad_n = n_pad - num_classes
    w2c = jnp.pad(w2.astype(mxu_dtype), ((0, 0), (0, pad_n)))
    b2c = jnp.pad(b2.astype(jnp.float32).reshape(1, num_classes),
                  ((0, 0), (0, pad_n)))

    x_bytes = jnp.dtype(features.dtype).itemsize
    num_cores = _num_tensorcores_per_chip()
    if block_b is None:
        block_b = _choose_block_b(B, in_size, hidden, n_pad, num_classes,
                                  x_bytes, num_cores)
    block_b = max(8, (block_b // 8) * 8)
    grid = (pl.cdiv(B, block_b),)

    # Right-size the VMEM limit from the actual block footprint (weights
    # budgeted double-buffered so the limit also covers the fallback path).
    w_bytes = jnp.dtype(mxu_dtype).itemsize
    vmem_need = (2 * block_b * in_size * x_bytes
                 + 2 * block_b * num_classes * 4
                 + 2 * block_b * (hidden + n_pad) * 4
                 + 2 * (in_size * hidden * w_bytes + hidden * 4
                        + hidden * n_pad * w_bytes + n_pad * 4))
    vmem_limit = int(min(max(8 << 20, vmem_need * 5 // 4), 56 << 20))

    kernel = _make_kernel(num_classes, mxu_dtype, precision)
    out_shape = jax.ShapeDtypeStruct((B, num_classes), jnp.float32)

    def build_specs(single_buffer_weights):
        def resident(shape):
            idx = lambda i: (0,) * len(shape)
            if single_buffer_weights and hasattr(pl, "Buffered"):
                try:
                    # Constant index_map => blocks never change; one buffer is enough.
                    return pl.BlockSpec(shape, idx, pipeline_mode=pl.Buffered(1))
                except TypeError:
                    pass
            return pl.BlockSpec(shape, idx)

        in_specs = [
            pl.BlockSpec((block_b, in_size), lambda i: (i, 0)),   # batch-tiled features
            resident((in_size, hidden)),                          # w1 (resident)
            resident((1, hidden)),                                # b1 (resident)
            resident((hidden, n_pad)),                            # w2 padded (resident)
            resident((1, n_pad)),                                 # b2 padded (resident)
        ]
        out_specs = pl.BlockSpec((block_b, num_classes), lambda i: (i, 0))
        return in_specs, out_specs

    def run(single_buffer_weights):
        in_specs, out_specs = build_specs(single_buffer_weights)
        return pl.pallas_call(
            kernel,
            out_shape=out_shape,
            grid_spec=pltpu.PrefetchScalarGridSpec(
                num_scalar_prefetch=0,
                grid=grid,
                in_specs=in_specs,
                out_specs=out_specs,
            ),
            compiler_params=pltpu.CompilerParams(
                dimension_semantics=("parallel",),
                vmem_limit_bytes=vmem_limit,
            ),
        )(features, w1c, b1c, w2c, b2c)

    try:
        return run(True)
    except Exception:
        # Fallback: default double-buffering if Buffered(1) is rejected by this
        # jax/Mosaic version.  Purely a pipelining hint; numerics are identical.
        return run(False)


if __name__ == "__main__":
    # Small shapes consistent with the module defaults:
    #   hidden_size = 256, num_classes = 2, input_size = 32, batch = 64
    B, INPUT, HIDDEN, CLASSES = 64, 32, 256, 2

    key = jax.random.PRNGKey(0)
    k_x, k_w1, k_b1, k_w2, k_b2 = jax.random.split(key, 5)

    # Features arrive in bf16 (exercises the no-wrapper-cast bf16 fast path).
    features = jax.random.normal(k_x, (B, INPUT), dtype=jnp.bfloat16)

    # Deterministic synthetic parameters (nn.Linear-like scale)
    w1 = jax.random.normal(k_w1, (INPUT, HIDDEN), dtype=jnp.float32) * (1.0 / INPUT ** 0.5)
    b1 = jax.random.normal(k_b1, (HIDDEN,), dtype=jnp.float32) * 0.01
    w2 = jax.random.normal(k_w2, (HIDDEN, CLASSES), dtype=jnp.float32) * (1.0 / HIDDEN ** 0.5)
    b2 = jax.random.normal(k_b2, (CLASSES,), dtype=jnp.float32) * 0.01

    # Pure-JAX reference of the module's float32 forward (dropout = identity),
    # full-precision dots so the exact-f32 path can be checked tightly.
    hp = jax.lax.Precision.HIGHEST
    x32 = features.astype(jnp.float32)
    h_ref = jnp.tanh(jnp.dot(x32, w1, precision=hp) + b1)
    ref = jnp.dot(h_ref, w2, precision=hp) + b2

    # Default (bf16 fast path): looser tolerance (both matmuls fed in bf16).
    out = jax.block_until_ready(prediction_classification(features, w1, b1, w2, b2))
    assert out.shape == (B, CLASSES)
    assert jnp.allclose(out, ref, atol=5e-2, rtol=5e-2), "bf16 path mismatch vs. reference"

    # Exact float32 path matches the PyTorch float32 semantics tightly.
    out_f32 = jax.block_until_ready(
        prediction_classification(features, w1, b1, w2, b2, use_bf16_matmul=False))
    assert out_f32.shape == (B, CLASSES)
    assert jnp.allclose(out_f32, ref, atol=1e-4, rtol=1e-4), "f32 path mismatch vs. reference"

    print("KERNEL_OK")
</pallas_src>

<mosaic_0001>
module attributes {stable_mosaic.version = 11 : i64} {
  func.func @kernel(%arg0: i32, %arg1: memref<64x32xbf16, #tpu.memory_space<vmem>>, %arg2: memref<32x256xbf16, #tpu.memory_space<vmem>>, %arg3: memref<1x256xf32, #tpu.memory_space<vmem>>, %arg4: memref<256x128xbf16, #tpu.memory_space<vmem>>, %arg5: memref<1x128xf32, #tpu.memory_space<vmem>>, %arg6: memref<64x2xf32, #tpu.memory_space<vmem>>) attributes {dimension_semantics = [#tpu.dimension_semantics<parallel>], iteration_bounds = array<i64: 1>, scalar_prefetch = 0 : i64, scratch_operands = 0 : i64, tpu.core_type = #tpu.core_type<tc>, window_params = [{transform_indices = @transform_0, window_bounds = array<i64: 64, 32>}, {pipeline_mode = #tpu.pipeline_mode<synchronous>, transform_indices = @transform_1, window_bounds = array<i64: 32, 256>}, {pipeline_mode = #tpu.pipeline_mode<synchronous>, transform_indices = @transform_2, window_bounds = array<i64: 1, 256>}, {pipeline_mode = #tpu.pipeline_mode<synchronous>, transform_indices = @transform_3, window_bounds = array<i64: 256, 128>}, {pipeline_mode = #tpu.pipeline_mode<synchronous>, transform_indices = @transform_4, window_bounds = array<i64: 1, 128>}, {transform_indices = @transform_5, window_bounds = array<i64: 64, 2>}]} {
    %c0 = arith.constant 0 : index
    %c0_0 = arith.constant 0 : index
    %0 = vector.load %arg1[%c0, %c0_0] : memref<64x32xbf16, #tpu.memory_space<vmem>>, vector<64x32xbf16>
    %c0_1 = arith.constant 0 : index
    %c0_2 = arith.constant 0 : index
    %1 = vector.load %arg2[%c0_1, %c0_2] : memref<32x256xbf16, #tpu.memory_space<vmem>>, vector<32x256xbf16>
    %cst = arith.constant dense<0.000000e+00> : vector<64x256xf32>
    %2 = tpu.matmul %0, %1, %cst {dimension_numbers = #tpu.dot_dimension_numbers<[1], [0], [0], [1], [0, 0, 1, 1], [], []>} : vector<64x32xbf16>, vector<32x256xbf16>, vector<64x256xf32> -> vector<64x256xf32>
    %c0_3 = arith.constant 0 : index
    %c0_4 = arith.constant 0 : index
    %3 = vector.load %arg3[%c0_3, %c0_4] : memref<1x256xf32, #tpu.memory_space<vmem>>, vector<1x256xf32>
    %4 = vector.broadcast %3 : vector<1x256xf32> to vector<64x256xf32>
    %5 = arith.addf %2, %4 : vector<64x256xf32>
    %6 = math.tanh %5 : vector<64x256xf32>
    %7 = arith.truncf %6 : vector<64x256xf32> to vector<64x256xbf16>
    %c0_5 = arith.constant 0 : index
    %c0_6 = arith.constant 0 : index
    %8 = vector.load %arg4[%c0_5, %c0_6] : memref<256x128xbf16, #tpu.memory_space<vmem>>, vector<256x128xbf16>
    %cst_7 = arith.constant dense<0.000000e+00> : vector<64x128xf32>
    %9 = tpu.matmul %7, %8, %cst_7 {dimension_numbers = #tpu.dot_dimension_numbers<[1], [0], [0], [1], [0, 0, 1, 1], [], []>} : vector<64x256xbf16>, vector<256x128xbf16>, vector<64x128xf32> -> vector<64x128xf32>
    %c0_8 = arith.constant 0 : index
    %c0_9 = arith.constant 0 : index
    %10 = vector.load %arg5[%c0_8, %c0_9] : memref<1x128xf32, #tpu.memory_space<vmem>>, vector<1x128xf32>
    %11 = vector.broadcast %10 : vector<1x128xf32> to vector<64x128xf32>
    %12 = arith.addf %9, %11 : vector<64x128xf32>
    %13 = vector.extract_strided_slice %12 {offsets = [0, 0], sizes = [64, 2], strides = [1, 1]} : vector<64x128xf32> to vector<64x2xf32>
    %c0_10 = arith.constant 0 : index
    %c0_11 = arith.constant 0 : index
    %14 = vector.load %arg6[%c0_10, %c0_11] : memref<64x2xf32, #tpu.memory_space<vmem>>, vector<64x2xf32>
    tpu.vector_store %arg6[%c0_10, %c0_11], %13 {strides = array<i32>} : memref<64x2xf32, #tpu.memory_space<vmem>>, vector<64x2xf32>,
    return
  }
  func.func @transform_0(%arg0: i32) -> (i32, i32) {
    %c0_i32 = arith.constant 0 : i32
    %c0_i32_0 = arith.constant 0 : i32
    return %arg0, %c0_i32 : i32, i32
  }
  func.func @transform_1(%arg0: i32) -> (i32, i32) {
    %c0_i32 = arith.constant 0 : i32
    %c0_i32_0 = arith.constant 0 : i32
    %c0_i32_1 = arith.constant 0 : i32
    return %c0_i32, %c0_i32_0 : i32, i32
  }
  func.func @transform_2(%arg0: i32) -> (i32, i32) {
    %c0_i32 = arith.constant 0 : i32
    %c0_i32_0 = arith.constant 0 : i32
    %c0_i32_1 = arith.constant 0 : i32
    return %c0_i32, %c0_i32_0 : i32, i32
  }
  func.func @transform_3(%arg0: i32) -> (i32, i32) {
    %c0_i32 = arith.constant 0 : i32
    %c0_i32_0 = arith.constant 0 : i32
    %c0_i32_1 = arith.constant 0 : i32
    return %c0_i32, %c0_i32_0 : i32, i32
  }
  func.func @transform_4(%arg0: i32) -> (i32, i32) {
    %c0_i32 = arith.constant 0 : i32
    %c0_i32_0 = arith.constant 0 : i32
    %c0_i32_1 = arith.constant 0 : i32
    return %c0_i32, %c0_i32_0 : i32, i32
  }
  func.func @transform_5(%arg0: i32) -> (i32, i32) {
    %c0_i32 = arith.constant 0 : i32
    %c0_i32_0 = arith.constant 0 : i32
    return %arg0, %c0_i32 : i32, i32
  }
}

module attributes {stable_mosaic.version = 11 : i64} {
  func.func @kernel(%arg0: i32, %arg1: memref<64x32xbf16, #tpu.memory_space<vmem>>, %arg2: memref<32x256xbf16, #tpu.memory_space<vmem>>, %arg3: memref<1x256xf32, #tpu.memory_space<vmem>>, %arg4: memref<256x128xbf16, #tpu.memory_space<vmem>>, %arg5: memref<1x128xf32, #tpu.memory_space<vmem>>, %arg6: memref<64x2xf32, #tpu.memory_space<vmem>>) attributes {dimension_semantics = [#tpu.dimension_semantics<parallel>], iteration_bounds = array<i64: 1>, scalar_prefetch = 0 : i64, scratch_operands = 0 : i64, tpu.core_type = #tpu.core_type<tc>, window_params = [{transform_indices = @transform_0, window_bounds = array<i64: 64, 32>}, {pipeline_mode = #tpu.pipeline_mode<synchronous>, transform_indices = @transform_1, window_bounds = array<i64: 32, 256>}, {pipeline_mode = #tpu.pipeline_mode<synchronous>, transform_indices = @transform_2, window_bounds = array<i64: 1, 256>}, {pipeline_mode = #tpu.pipeline_mode<synchronous>, transform_indices = @transform_3, window_bounds = array<i64: 256, 128>}, {pipeline_mode = #tpu.pipeline_mode<synchronous>, transform_indices = @transform_4, window_bounds = array<i64: 1, 128>}, {transform_indices = @transform_5, window_bounds = array<i64: 64, 2>}]} {
    %c0 = arith.constant 0 : index
    %c0_0 = arith.constant 0 : index
    %0 = vector.load %arg1[%c0, %c0_0] : memref<64x32xbf16, #tpu.memory_space<vmem>>, vector<64x32xbf16>
    %c0_1 = arith.constant 0 : index
    %c0_2 = arith.constant 0 : index
    %1 = vector.load %arg2[%c0_1, %c0_2] : memref<32x256xbf16, #tpu.memory_space<vmem>>, vector<32x256xbf16>
    %cst = arith.constant dense<0.000000e+00> : vector<64x256xf32>
    %2 = tpu.matmul %0, %1, %cst {dimension_numbers = #tpu.dot_dimension_numbers<[1], [0], [0], [1], [0, 0, 1, 1], [], []>} : vector<64x32xbf16>, vector<32x256xbf16>, vector<64x256xf32> -> vector<64x256xf32>
    %c0_3 = arith.constant 0 : index
    %c0_4 = arith.constant 0 : index
    %3 = vector.load %arg3[%c0_3, %c0_4] : memref<1x256xf32, #tpu.memory_space<vmem>>, vector<1x256xf32>
    %4 = vector.broadcast %3 : vector<1x256xf32> to vector<64x256xf32>
    %5 = arith.addf %2, %4 : vector<64x256xf32>
    %6 = math.tanh %5 : vector<64x256xf32>
    %7 = arith.truncf %6 : vector<64x256xf32> to vector<64x256xbf16>
    %c0_5 = arith.constant 0 : index
    %c0_6 = arith.constant 0 : index
    %8 = vector.load %arg4[%c0_5, %c0_6] : memref<256x128xbf16, #tpu.memory_space<vmem>>, vector<256x128xbf16>
    %cst_7 = arith.constant dense<0.000000e+00> : vector<64x128xf32>
    %9 = tpu.matmul %7, %8, %cst_7 {dimension_numbers = #tpu.dot_dimension_numbers<[1], [0], [0], [1], [0, 0, 1, 1], [], []>} : vector<64x256xbf16>, vector<256x128xbf16>, vector<64x128xf32> -> vector<64x128xf32>
    %c0_8 = arith.constant 0 : index
    %c0_9 = arith.constant 0 : index
    %10 = vector.load %arg5[%c0_8, %c0_9] : memref<1x128xf32, #tpu.memory_space<vmem>>, vector<1x128xf32>
    %11 = vector.broadcast %10 : vector<1x128xf32> to vector<64x128xf32>
    %12 = arith.addf %9, %11 : vector<64x128xf32>
    %13 = vector.extract_strided_slice %12 {offsets = [0, 0], sizes = [64, 2], strides = [1, 1]} : vector<64x128xf32> to vector<64x2xf32>
    %c0_10 = arith.constant 0 : index
    %c0_11 = arith.constant 0 : index
    %14 = vector.load %arg6[%c0_10, %c0_11] : memref<64x2xf32, #tpu.memory_space<vmem>>, vector<64x2xf32>
    tpu.vector_store %arg6[%c0_10, %c0_11], %13 {strides = array<i32>} : memref<64x2xf32, #tpu.memory_space<vmem>>, vector<64x2xf32>,
    return
  }
  func.func @transform_0(%arg0: i32) -> (i32, i32) {
    %c0_i32 = arith.constant 0 : i32
    %c0_i32_0 = arith.constant 0 : i32
    return %arg0, %c0_i32 : i32, i32
  }
  func.func @transform_1(%arg0: i32) -> (i32, i32) {
    %c0_i32 = arith.constant 0 : i32
    %c0_i32_0 = arith.constant 0 : i32
    %c0_i32_1 = arith.constant 0 : i32
    return %c0_i32, %c0_i32_0 : i32, i32
  }
  func.func @transform_2(%arg0: i32) -> (i32, i32) {
    %c0_i32 = arith.constant 0 : i32
    %c0_i32_0 = arith.constant 0 : i32
    %c0_i32_1 = arith.constant 0 : i32
    return %c0_i32, %c0_i32_0 : i32, i32
  }
  func.func @transform_3(%arg0: i32) -> (i32, i32) {
    %c0_i32 = arith.constant 0 : i32
    %c0_i32_0 = arith.constant 0 : i32
    %c0_i32_1 = arith.constant 0 : i32
    return %c0_i32, %c0_i32_0 : i32, i32
  }
  func.func @transform_4(%arg0: i32) -> (i32, i32) {
    %c0_i32 = arith.constant 0 : i32
    %c0_i32_0 = arith.constant 0 : i32
    %c0_i32_1 = arith.constant 0 : i32
    return %c0_i32, %c0_i32_0 : i32, i32
  }
  func.func @transform_5(%arg0: i32) -> (i32, i32) {
    %c0_i32 = arith.constant 0 : i32
    %c0_i32_0 = arith.constant 0 : i32
    return %arg0, %c0_i32 : i32, i32
  }
}

</mosaic_0001>

<llo_original>
// kernel: tpu_custom_call.1
$region0: #{tpu_custom_call.1}
  #allocation0 [shape = 'u32[]', space=smem, size = 0x4, offset = 0x4, fixed_abs, tag = 'smem constant byte address 0x4 - core index']
  #allocation1 [shape = 'u32[144,128]{1,0:T(1,128)}', space=vmem, size = 0x12000, scoped, tag = 'internal scratch']
  %s0 = inlined_call_operand.vmem [shape: bf16[64,32], index: 0, kind: input, shape index: {}]
  %s1 = inlined_call_operand.vmem [shape: bf16[32,256], index: 1, kind: input, shape index: {}]
  %s2 = inlined_call_operand.vmem [shape: f32[1,256], index: 2, kind: input, shape index: {}]
  %s3 = inlined_call_operand.hbm [shape: bf16[256,128], index: 3, kind: input, shape index: {}]
  %s4 = inlined_call_operand.vmem [shape: f32[1,128], index: 4, kind: input, shape index: {}]
  %s5 = inlined_call_operand.vmem [shape: f32[64,2], index: 5, kind: output, shape index: {}]
  %s6 = sld [smem:[#allocation0]]
  $region34: #{tpu_custom_call.1} parent=0
    _
  %s8 = ssub.s32 1, %s6
  %s9 = scalar_select 0, %s8, %s6
  $region1: #{tpu_custom_call.1} parent=0
    #allocation2 [shape = 'u8[65536]{0}', space=vmem, size = 0x10000, scoped, tag = 'input window, operand 3, single buffered']
    #allocation3 [shape = 's32[1]{0}', space=sflag, size = 0x4, scoped, tag = 'scoped memory for tpu_custom_call.1']
    %10 = vsyncpa [#allocation3], 0
    // Predicated region
    $region2: #{tpu_custom_call.1} parent=1 // pred_check
      _
    $region3: #{tpu_custom_call.1} parent=1 // pred_check_branch
      %12 = sbr.rel (0) target = $region5
    $region4: #{tpu_custom_call.1} parent=1 // pred_region
      _
    $region5: #{tpu_custom_call.1} parent=1 // pred_fallthru
      _
    // Predicated region
    $region6: #{tpu_custom_call.1} parent=1 // pred_check
      _
    $region7: #{tpu_custom_call.1} parent=1 // pred_check_branch
      %14 = sbr.rel (0) target = $region9
    $region8: #{tpu_custom_call.1} parent=1 // pred_region
      _
    $region9: #{tpu_custom_call.1} parent=1 // pred_fallthru
      _
    // Predicated region
    $region10: #{tpu_custom_call.1} parent=1 // pred_check
      _
    $region11: #{tpu_custom_call.1} parent=1 // pred_check_branch
      %16 = sbr.rel (0) target = $region13
    $region12: #{tpu_custom_call.1} parent=1 // pred_region
      _
    $region13: #{tpu_custom_call.1} parent=1 // pred_fallthru
      _
    // Predicated region
    $region14: #{tpu_custom_call.1} parent=1 // pred_check
      _
    $region15: #{tpu_custom_call.1} parent=1 // pred_check_branch
      %18 = sbr.rel (0) target = $region17
    $region16: #{tpu_custom_call.1} parent=1 // pred_region
      %s20 = ssub.s32 2048, 2048
      %21 = vsyncadd [#allocation3], %s20
      %s22 = sshll.u32 [#allocation2], 4
      %s23 = int_to_ptr.vmem [resolvable:$true] %s22
      %28 = dma.hbm_to_vmem [thread:$0]  %s3, 2048, %s23, [#allocation3], 64, 64, 4
    $region17: #{tpu_custom_call.1} parent=1 // pred_fallthru
      _
    // Predicated region
    $region18: #{tpu_custom_call.1} parent=1 // pred_check
      _
    $region19: #{tpu_custom_call.1} parent=1 // pred_check_branch
      %30 = sbr.rel (0) target = $region21
    $region20: #{tpu_custom_call.1} parent=1 // pred_region
      _
    $region21: #{tpu_custom_call.1} parent=1 // pred_fallthru
      _
    // Predicated region
    $region22: #{tpu_custom_call.1} parent=1 // pred_check
      _
    $region23: #{tpu_custom_call.1} parent=1 // pred_check_branch
      %32 = sbr.rel (0) target = $region25
    $region24: #{tpu_custom_call.1} parent=1 // pred_region
      %33 = dma.done [#allocation3], 2048
    $region25: #{tpu_custom_call.1} parent=1 // pred_fallthru
      _
    %v35 = vld [vmem:[%s0] sm:$0xf]
    %v36 = vld [vmem:[%s0 + $0x4] sm:$0xf]
    %v37 = vld [vmem:[%s0 + $0x8] sm:$0xf]
    %v38 = vld [vmem:[%s0 + $0xc] sm:$0xf]
    %v39 = vld [vmem:[%s0 + $0x10] sm:$0xf]
    %v40 = vld [vmem:[%s0 + $0x14] sm:$0xf]
    %v41 = vld [vmem:[%s0 + $0x18] sm:$0xf]
    %v42 = vld [vmem:[%s0 + $0x1c] sm:$0xf]
    %v43 = vld [vmem:[%s1] sm:$0xff]
    %v44 = vld [vmem:[%s1 + $0x8] sm:$0xff]
    %v45 = vld [vmem:[%s1 + $0x10] sm:$0xff]
    %v46 = vld [vmem:[%s1 + $0x18] sm:$0xff]
    %v47 = vld [vmem:[%s2] sm:$0x3]
    %v49 = vlaneseq
    %v50 = vshrl.u32 %v49, 7
    %v51 = vsub.s32 0, %v50
    %v52 = vrot.slane %v47, %v51
    %v53 = vlaneseq
    %v54 = vshrl.u32 %v53, 7
    %v55 = vsub.s32 1, %v54
    %v56 = vrot.slane %v47, %v55
    %v67 = vunpack.c.l.b16 %v35
    %v68 = vunpack.c.l.b16 %v36
    %v69 = vunpack.c.l.b16 %v37
    %v70 = vunpack.c.l.b16 %v38
    %v71 = vunpack.c.l.b16 %v39
    %v72 = vunpack.c.l.b16 %v40
    %v73 = vunpack.c.l.b16 %v41
    %v74 = vunpack.c.l.b16 %v42
    %v75 = vpack.c.b16 %v68, %v67
    %v76 = vpack.c.b16 %v70, %v69
    %v77 = vpack.c.b16 %v72, %v71
    %v78 = vpack.c.b16 %v74, %v73
    %v83 = vunpack.c.l.b16 %v43
    %v84 = vunpack.c.h.b16 %v43
    %v85 = vunpack.c.l.b16 %v44
    %v86 = vunpack.c.h.b16 %v44
    %v87 = vunpack.c.l.b16 %v45
    %v88 = vunpack.c.h.b16 %v45
    %v89 = vunpack.c.l.b16 %v46
    %v90 = vunpack.c.h.b16 %v46
    %v91 = vpack.c.b16 %v85, %v83
    %v92 = vpack.c.b16 %v86, %v84
    %v93 = vpack.c.b16 %v89, %v87
    %v94 = vpack.c.b16 %v90, %v88
    %vm99 = vcmask 261120
    %v101 = vsel %vm99, %v75, 0
    %v104 = vsel %vm99, %v76, 0
    %v107 = vsel %vm99, %v77, 0
    %v110 = vsel %vm99, %v78, 0
    %112 = vmatprep.subr.bf16.mxu0 %v92
    %113 = vmatpush1.bf16.msra.mxu0 %v91
    %114 = vmatprep.subr.bf16.mxu0 %v94
    %115 = vmatpush1.bf16.msra.mxu0 %v93
    %116 = vmatprep.subr.bf16.mxu0 0
    %117 = vmatpush1.bf16.msra.mxu0 0
    %118 = vmatprep.subr.bf16.mxu0 0
    %119 = vmatpush1.bf16.msra.mxu0 0
    %120 = vmatprep.subr.bf16.mxu0 0
    %121 = vmatpush1.bf16.msra.mxu0 0
    %122 = vmatprep.subr.bf16.mxu0 0
    %123 = vmatpush1.bf16.msra.mxu0 0
    %124 = vmatprep.subr.bf16.mxu0 0
    %125 = vmatpush1.bf16.msra.mxu0 0
    %126 = vmatprep.subr.bf16.mxu0 0
    %127 = vmatpush1.bf16.msra.mxu0 0
    %128 = vmatprep.subr.bf16.mxu0 0
    %129 = vmatpush1.bf16.msra.mxu0 0
    %130 = vmatprep.subr.bf16.mxu0 0
    %131 = vmatpush1.bf16.msra.mxu0 0
    %132 = vmatprep.subr.bf16.mxu0 0
    %133 = vmatpush1.bf16.msra.mxu0 0
    %134 = vmatprep.subr.bf16.mxu0 0
    %135 = vmatpush1.bf16.msra.mxu0 0
    %136 = vmatprep.subr.bf16.mxu0 0
    %137 = vmatpush1.bf16.msra.mxu0 0
    %138 = vmatprep.subr.bf16.mxu0 0
    %139 = vmatpush1.bf16.msra.mxu0 0
    %140 = vmatprep.subr.bf16.mxu0 0
    %141 = vmatpush1.bf16.msra.mxu0 0
    %142 = vmatprep.subr.bf16.mxu0 0
    %143 = vmatpush1.bf16.msra.mxu0 0
    %144 = vmatprep.mubr.bf16.mxu0 0
    %145 = vmatmul.mubr.bf16.gmra.mrb[0].mxu0 %v101
    %v146 = vpop.f32.mrb[0].mxu0
    %v147 = vadd.f32 %v52, %v146
    %v148 = vpop.f32.mrb[0].mxu0
    %v149 = vadd.f32 %v56, %v148
    %v150 = vpop.f32.mrb[0].mxu0
    %v151 = vadd.f32 %v52, %v150
    %v152 = vpop.f32.mrb[0].mxu0
    %v153 = vadd.f32 %v56, %v152
    %154 = vmatprep.mubr.bf16.mxu0 0
    %155 = vmatmul.mubr.bf16.gmra.mrb[0].mxu0 %v104
    %v156 = vpop.f32.mrb[0].mxu0
    %v157 = vadd.f32 %v52, %v156
    %v158 = vpop.f32.mrb[0].mxu0
    %v159 = vadd.f32 %v56, %v158
    %v160 = vpop.f32.mrb[0].mxu0
    %v161 = vadd.f32 %v52, %v160
    %v162 = vpop.f32.mrb[0].mxu0
    %v163 = vadd.f32 %v56, %v162
    %164 = vmatprep.mubr.bf16.mxu0 0
    %165 = vmatmul.mubr.bf16.gmra.mrb[0].mxu0 %v107
    %v166 = vpop.f32.mrb[0].mxu0
    %v167 = vadd.f32 %v52, %v166
    %v168 = vpop.f32.mrb[0].mxu0
    %v169 = vadd.f32 %v56, %v168
    %v170 = vpop.f32.mrb[0].mxu0
    %v171 = vadd.f32 %v52, %v170
    %v172 = vpop.f32.mrb[0].mxu0
    %v173 = vadd.f32 %v56, %v172
    %174 = vmatprep.mubr.bf16.mxu0 0
    %175 = vmatmul.mubr.bf16.gmra.mrb[0].mxu0 %v110
    %v176 = vpop.f32.mrb[0].mxu0
    %v177 = vadd.f32 %v52, %v176
    %v178 = vpop.f32.mrb[0].mxu0
    %v179 = vadd.f32 %v56, %v178
    %v180 = vpop.f32.mrb[0].mxu0
    %v181 = vadd.f32 %v52, %v180
    %v182 = vpop.f32.mrb[0].mxu0
    %v183 = vadd.f32 %v56, %v182
    %184 = vdwg.mxu0
    %v185 = vtanh.pop %v147
    %v186 = vtanh.pop %v149
    %v187 = vtanh.pop %v151
    %v188 = vtanh.pop %v153
    %v189 = vtanh.pop %v157
    %v190 = vtanh.pop %v159
    %v191 = vtanh.pop %v161
    %v192 = vtanh.pop %v163
    %v193 = vtanh.pop %v167
    %v194 = vtanh.pop %v169
    %v195 = vtanh.pop %v171
    %v196 = vtanh.pop %v173
    %v197 = vtanh.pop %v177
    %v198 = vtanh.pop %v179
    %v199 = vtanh.pop %v181
    %v200 = vtanh.pop %v183
    %v201 = vpack.c.bf16 %v187, %v185
    %v202 = vpack.c.bf16 %v188, %v186
    %v203 = vpack.c.bf16 %v191, %v189
    %v204 = vpack.c.bf16 %v192, %v190
    %v205 = vpack.c.bf16 %v195, %v193
    %v206 = vpack.c.bf16 %v196, %v194
    %v207 = vpack.c.bf16 %v199, %v197
    %v208 = vpack.c.bf16 %v200, %v198
    %v209 = vld [vmem:[#allocation2] sm:$0xf]
    %v210 = vld [vmem:[#allocation2 + $0x4] sm:$0xf]
    %v211 = vld [vmem:[#allocation2 + $0x8] sm:$0xf]
    %v212 = vld [vmem:[#allocation2 + $0xc] sm:$0xf]
    %v213 = vld [vmem:[#allocation2 + $0x10] sm:$0xf]
    %v214 = vld [vmem:[#allocation2 + $0x14] sm:$0xf]
    %v215 = vld [vmem:[#allocation2 + $0x18] sm:$0xf]
    %v216 = vld [vmem:[#allocation2 + $0x1c] sm:$0xf]
    %v217 = vld [vmem:[#allocation2 + $0x20] sm:$0xf]
    %v218 = vld [vmem:[#allocation2 + $0x24] sm:$0xf]
    %v219 = vld [vmem:[#allocation2 + $0x28] sm:$0xf]
    %v220 = vld [vmem:[#allocation2 + $0x2c] sm:$0xf]
    %v221 = vld [vmem:[#allocation2 + $0x30] sm:$0xf]
    %v222 = vld [vmem:[#allocation2 + $0x34] sm:$0xf]
    %v223 = vld [vmem:[#allocation2 + $0x38] sm:$0xf]
    %v224 = vld [vmem:[#allocation2 + $0x3c] sm:$0xf]
    %v225 = vld [vmem:[#allocation2 + $0x40] sm:$0xf]
    %v226 = vld [vmem:[#allocation2 + $0x44] sm:$0xf]
    %v227 = vld [vmem:[#allocation2 + $0x48] sm:$0xf]
    %v228 = vld [vmem:[#allocation2 + $0x4c] sm:$0xf]
    %v229 = vld [vmem:[#allocation2 + $0x50] sm:$0xf]
    %v230 = vld [vmem:[#allocation2 + $0x54] sm:$0xf]
    %v231 = vld [vmem:[#allocation2 + $0x58] sm:$0xf]
    %v232 = vld [vmem:[#allocation2 + $0x5c] sm:$0xf]
    %v233 = vld [vmem:[#allocation2 + $0x60] sm:$0xf]
    %v234 = vld [vmem:[#allocation2 + $0x64] sm:$0xf]
    %v235 = vld [vmem:[#allocation2 + $0x68] sm:$0xf]
    %v236 = vld [vmem:[#allocation2 + $0x6c] sm:$0xf]
    %v237 = vld [vmem:[#allocation2 + $0x70] sm:$0xf]
    %v238 = vld [vmem:[#allocation2 + $0x74] sm:$0xf]
    %v239 = vld [vmem:[#allocation2 + $0x78] sm:$0xf]
    %v240 = vld [vmem:[#allocation2 + $0x7c] sm:$0xf]
    %v241 = vld [vmem:[%s4] sm:$0x1]
    %v243 = vlaneseq
    %v244 = vshrl.u32 %v243, 7
    %v245 = vsub.s32 0, %v244
    %v246 = vrot.slane %v241, %v245
    %v280 = vunpack.c.l.b16 %v209
    %v281 = vunpack.c.l.b16 %v210
    %v282 = vunpack.c.l.b16 %v211
    %v283 = vunpack.c.l.b16 %v212
    %v284 = vunpack.c.l.b16 %v213
    %v285 = vunpack.c.l.b16 %v214
    %v286 = vunpack.c.l.b16 %v215
    %v287 = vunpack.c.l.b16 %v216
    %v288 = vunpack.c.l.b16 %v217
    %v289 = vunpack.c.l.b16 %v218
    %v290 = vunpack.c.l.b16 %v219
    %v291 = vunpack.c.l.b16 %v220
    %v292 = vunpack.c.l.b16 %v221
    %v293 = vunpack.c.l.b16 %v222
    %v294 = vunpack.c.l.b16 %v223
    %v295 = vunpack.c.l.b16 %v224
    %v296 = vunpack.c.l.b16 %v225
    %v297 = vunpack.c.l.b16 %v226
    %v298 = vunpack.c.l.b16 %v227
    %v299 = vunpack.c.l.b16 %v228
    %v300 = vunpack.c.l.b16 %v229
    %v301 = vunpack.c.l.b16 %v230
    %v302 = vunpack.c.l.b16 %v231
    %v303 = vunpack.c.l.b16 %v232
    %v304 = vunpack.c.l.b16 %v233
    %v305 = vunpack.c.l.b16 %v234
    %v306 = vunpack.c.l.b16 %v235
    %v307 = vunpack.c.l.b16 %v236
    %v308 = vunpack.c.l.b16 %v237
    %v309 = vunpack.c.l.b16 %v238
    %v310 = vunpack.c.l.b16 %v239
    %v311 = vunpack.c.l.b16 %v240
    %v312 = vpack.c.b16 %v281, %v280
    %v313 = vpack.c.b16 %v283, %v282
    %v314 = vpack.c.b16 %v285, %v284
    %v315 = vpack.c.b16 %v287, %v286
    %v316 = vpack.c.b16 %v289, %v288
    %v317 = vpack.c.b16 %v291, %v290
    %v318 = vpack.c.b16 %v293, %v292
    %v319 = vpack.c.b16 %v295, %v294
    %v320 = vpack.c.b16 %v297, %v296
    %v321 = vpack.c.b16 %v299, %v298
    %v322 = vpack.c.b16 %v301, %v300
    %v323 = vpack.c.b16 %v303, %v302
    %v324 = vpack.c.b16 %v305, %v304
    %v325 = vpack.c.b16 %v307, %v306
    %v326 = vpack.c.b16 %v309, %v308
    %v327 = vpack.c.b16 %v311, %v310
    %344 = vmatprep.subr.bf16.mxu0 0
    %345 = vmatpush1.bf16.msra.mxu0 %v312
    %346 = vmatprep.subr.bf16.mxu0 0
    %347 = vmatpush1.bf16.msra.mxu0 %v313
    %348 = vmatprep.subr.bf16.mxu0 0
    %349 = vmatpush1.bf16.msra.mxu0 %v314
    %350 = vmatprep.subr.bf16.mxu0 0
    %351 = vmatpush1.bf16.msra.mxu0 %v315
    %352 = vmatprep.subr.bf16.mxu0 0
    %353 = vmatpush1.bf16.msra.mxu0 %v316
    %354 = vmatprep.subr.bf16.mxu0 0
    %355 = vmatpush1.bf16.msra.mxu0 %v317
    %356 = vmatprep.subr.bf16.mxu0 0
    %357 = vmatpush1.bf16.msra.mxu0 %v318
    %358 = vmatprep.subr.bf16.mxu0 0
    %359 = vmatpush1.bf16.msra.mxu0 %v319
    %360 = vmatprep.subr.bf16.mxu0 0
    %361 = vmatpush1.bf16.msra.mxu0 %v320
    %362 = vmatprep.subr.bf16.mxu0 0
    %363 = vmatpush1.bf16.msra.mxu0 %v321
    %364 = vmatprep.subr.bf16.mxu0 0
    %365 = vmatpush1.bf16.msra.mxu0 %v322
    %366 = vmatprep.subr.bf16.mxu0 0
    %367 = vmatpush1.bf16.msra.mxu0 %v323
    %368 = vmatprep.subr.bf16.mxu0 0
    %369 = vmatpush1.bf16.msra.mxu0 %v324
    %370 = vmatprep.subr.bf16.mxu0 0
    %371 = vmatpush1.bf16.msra.mxu0 %v325
    %372 = vmatprep.subr.bf16.mxu0 0
    %373 = vmatpush1.bf16.msra.mxu0 %v326
    %374 = vmatprep.subr.bf16.mxu0 0
    %375 = vmatpush1.bf16.msra.mxu0 %v327
    %376 = vmatprep.mubr.bf16.mxu0 %v202
    %377 = vmatmul.mubr.bf16.gmra.mrb[0].mxu0 %v201
    %v378 = vpop.f32.mrb[0].mxu0
    %v379 = vadd.f32 %v246, %v378
    %v380 = vpop.f32.mrb[0].mxu0
    %v381 = vpop.f32.mrb[0].mxu0
    %v382 = vadd.f32 %v246, %v381
    %v383 = vpop.f32.mrb[0].mxu0
    %384 = vmatprep.mubr.bf16.mxu0 %v204
    %385 = vmatmul.mubr.bf16.gmra.mrb[0].mxu0 %v203
    %v386 = vpop.f32.mrb[0].mxu0
    %v387 = vadd.f32 %v246, %v386
    %v388 = vpop.f32.mrb[0].mxu0
    %v389 = vpop.f32.mrb[0].mxu0
    %v390 = vadd.f32 %v246, %v389
    %v391 = vpop.f32.mrb[0].mxu0
    %392 = vmatprep.mubr.bf16.mxu0 %v206
    %393 = vmatmul.mubr.bf16.gmra.mrb[0].mxu0 %v205
    %v394 = vpop.f32.mrb[0].mxu0
    %v395 = vadd.f32 %v246, %v394
    %v396 = vpop.f32.mrb[0].mxu0
    %v397 = vpop.f32.mrb[0].mxu0
    %v398 = vadd.f32 %v246, %v397
    %v399 = vpop.f32.mrb[0].mxu0
    %400 = vmatprep.mubr.bf16.mxu0 %v208
    %401 = vmatmul.mubr.bf16.gmra.mrb[0].mxu0 %v207
    %v402 = vpop.f32.mrb[0].mxu0
    %v403 = vadd.f32 %v246, %v402
    %v404 = vpop.f32.mrb[0].mxu0
    %v405 = vpop.f32.mrb[0].mxu0
    %v406 = vadd.f32 %v246, %v405
    %v407 = vpop.f32.mrb[0].mxu0
    %408 = vdwg.mxu0
    %vm409 = vcmask 15360
    %410 = vst.msk [vmem:[%s5] sm:$0xff] %vm409, %v379
    %411 = vst.msk [vmem:[%s5 + $0x8] sm:$0xff] %vm409, %v382
    %412 = vst.msk [vmem:[%s5 + $0x10] sm:$0xff] %vm409, %v387
    %413 = vst.msk [vmem:[%s5 + $0x18] sm:$0xff] %vm409, %v390
    %414 = vst.msk [vmem:[%s5 + $0x20] sm:$0xff] %vm409, %v395
    %415 = vst.msk [vmem:[%s5 + $0x28] sm:$0xff] %vm409, %v398
    %416 = vst.msk [vmem:[%s5 + $0x30] sm:$0xff] %vm409, %v403
    %417 = vst.msk [vmem:[%s5 + $0x38] sm:$0xff] %vm409, %v406
    // Predicated region
    $region26: #{tpu_custom_call.1} parent=1 // pred_check
      _
    $region27: #{tpu_custom_call.1} parent=1 // pred_check_branch
      %419 = sbr.rel (0) target = $region29
    $region28: #{tpu_custom_call.1} parent=1 // pred_region
      _
    $region29: #{tpu_custom_call.1} parent=1 // pred_fallthru
      _
    // Predicated region
    $region30: #{tpu_custom_call.1} parent=1 // pred_check
      _
    $region31: #{tpu_custom_call.1} parent=1 // pred_check_branch
      %421 = sbr.rel (0) target = $region33
    $region32: #{tpu_custom_call.1} parent=1 // pred_region
      _
    $region33: #{tpu_custom_call.1} parent=1 // pred_fallthru
      _
    %422 = vsyncpa [#allocation3], 1

// kernel: tpu_custom_call.1
$region0: #{tpu_custom_call.1}
  #allocation0 [shape = 'u32[]', space=smem, size = 0x4, offset = 0x4, fixed_abs, tag = 'smem constant byte address 0x4 - core index']
  #allocation1 [shape = 'u32[144,128]{1,0:T(1,128)}', space=vmem, size = 0x12000, scoped, tag = 'internal scratch']
  %s0 = inlined_call_operand.vmem [shape: bf16[64,32], index: 0, kind: input, shape index: {}]
  %s1 = inlined_call_operand.vmem [shape: bf16[32,256], index: 1, kind: input, shape index: {}]
  %s2 = inlined_call_operand.vmem [shape: f32[1,256], index: 2, kind: input, shape index: {}]
  %s3 = inlined_call_operand.hbm [shape: bf16[256,128], index: 3, kind: input, shape index: {}]
  %s4 = inlined_call_operand.vmem [shape: f32[1,128], index: 4, kind: input, shape index: {}]
  %s5 = inlined_call_operand.vmem [shape: f32[64,2], index: 5, kind: output, shape index: {}]
  %s6 = sld [smem:[#allocation0]]
  $region34: #{tpu_custom_call.1} parent=0
    _
  %s8 = ssub.s32 1, %s6
  %s9 = scalar_select 0, %s8, %s6
  $region1: #{tpu_custom_call.1} parent=0
    #allocation2 [shape = 'u8[65536]{0}', space=vmem, size = 0x10000, scoped, tag = 'input window, operand 3, single buffered']
    #allocation3 [shape = 's32[1]{0}', space=sflag, size = 0x4, scoped, tag = 'scoped memory for tpu_custom_call.1']
    %10 = vsyncpa [#allocation3], 0
    // Predicated region
    $region2: #{tpu_custom_call.1} parent=1 // pred_check
      _
    $region3: #{tpu_custom_call.1} parent=1 // pred_check_branch
      %12 = sbr.rel (0) target = $region5
    $region4: #{tpu_custom_call.1} parent=1 // pred_region
      _
    $region5: #{tpu_custom_call.1} parent=1 // pred_fallthru
      _
    // Predicated region
    $region6: #{tpu_custom_call.1} parent=1 // pred_check
      _
    $region7: #{tpu_custom_call.1} parent=1 // pred_check_branch
      %14 = sbr.rel (0) target = $region9
    $region8: #{tpu_custom_call.1} parent=1 // pred_region
      _
    $region9: #{tpu_custom_call.1} parent=1 // pred_fallthru
      _
    // Predicated region
    $region10: #{tpu_custom_call.1} parent=1 // pred_check
      _
    $region11: #{tpu_custom_call.1} parent=1 // pred_check_branch
      %16 = sbr.rel (0) target = $region13
    $region12: #{tpu_custom_call.1} parent=1 // pred_region
      _
    $region13: #{tpu_custom_call.1} parent=1 // pred_fallthru
      _
    // Predicated region
    $region14: #{tpu_custom_call.1} parent=1 // pred_check
      _
    $region15: #{tpu_custom_call.1} parent=1 // pred_check_branch
      %18 = sbr.rel (0) target = $region17
    $region16: #{tpu_custom_call.1} parent=1 // pred_region
      %s20 = ssub.s32 2048, 2048
      %21 = vsyncadd [#allocation3], %s20
      %s22 = sshll.u32 [#allocation2], 4
      %s23 = int_to_ptr.vmem [resolvable:$true] %s22
      %28 = dma.hbm_to_vmem [thread:$0]  %s3, 2048, %s23, [#allocation3], 64, 64, 4
    $region17: #{tpu_custom_call.1} parent=1 // pred_fallthru
      _
    // Predicated region
    $region18: #{tpu_custom_call.1} parent=1 // pred_check
      _
    $region19: #{tpu_custom_call.1} parent=1 // pred_check_branch
      %30 = sbr.rel (0) target = $region21
    $region20: #{tpu_custom_call.1} parent=1 // pred_region
      _
    $region21: #{tpu_custom_call.1} parent=1 // pred_fallthru
      _
    // Predicated region
    $region22: #{tpu_custom_call.1} parent=1 // pred_check
      _
    $region23: #{tpu_custom_call.1} parent=1 // pred_check_branch
      %32 = sbr.rel (0) target = $region25
    $region24: #{tpu_custom_call.1} parent=1 // pred_region
      %33 = dma.done [#allocation3], 2048
    $region25: #{tpu_custom_call.1} parent=1 // pred_fallthru
      _
    %v35 = vld [vmem:[%s0] sm:$0xf]
    %v36 = vld [vmem:[%s0 + $0x4] sm:$0xf]
    %v37 = vld [vmem:[%s0 + $0x8] sm:$0xf]
    %v38 = vld [vmem:[%s0 + $0xc] sm:$0xf]
    %v39 = vld [vmem:[%s0 + $0x10] sm:$0xf]
    %v40 = vld [vmem:[%s0 + $0x14] sm:$0xf]
    %v41 = vld [vmem:[%s0 + $0x18] sm:$0xf]
    %v42 = vld [vmem:[%s0 + $0x1c] sm:$0xf]
    %v43 = vld [vmem:[%s1] sm:$0xff]
    %v44 = vld [vmem:[%s1 + $0x8] sm:$0xff]
    %v45 = vld [vmem:[%s1 + $0x10] sm:$0xff]
    %v46 = vld [vmem:[%s1 + $0x18] sm:$0xff]
    %v47 = vld [vmem:[%s2] sm:$0x3]
    %v49 = vlaneseq
    %v50 = vshrl.u32 %v49, 7
    %v51 = vsub.s32 0, %v50
    %v52 = vrot.slane %v47, %v51
    %v53 = vlaneseq
    %v54 = vshrl.u32 %v53, 7
    %v55 = vsub.s32 1, %v54
    %v56 = vrot.slane %v47, %v55
    %v67 = vunpack.c.l.b16 %v35
    %v68 = vunpack.c.l.b16 %v36
    %v69 = vunpack.c.l.b16 %v37
    %v70 = vunpack.c.l.b16 %v38
    %v71 = vunpack.c.l.b16 %v39
    %v72 = vunpack.c.l.b16 %v40
    %v73 = vunpack.c.l.b16 %v41
    %v74 = vunpack.c.l.b16 %v42
    %v75 = vpack.c.b16 %v68, %v67
    %v76 = vpack.c.b16 %v70, %v69
    %v77 = vpack.c.b16 %v72, %v71
    %v78 = vpack.c.b16 %v74, %v73
    %v83 = vunpack.c.l.b16 %v43
    %v84 = vunpack.c.h.b16 %v43
    %v85 = vunpack.c.l.b16 %v44
    %v86 = vunpack.c.h.b16 %v44
    %v87 = vunpack.c.l.b16 %v45
    %v88 = vunpack.c.h.b16 %v45
    %v89 = vunpack.c.l.b16 %v46
    %v90 = vunpack.c.h.b16 %v46
    %v91 = vpack.c.b16 %v85, %v83
    %v92 = vpack.c.b16 %v86, %v84
    %v93 = vpack.c.b16 %v89, %v87
    %v94 = vpack.c.b16 %v90, %v88
    %vm99 = vcmask 261120
    %v101 = vsel %vm99, %v75, 0
    %v104 = vsel %vm99, %v76, 0
    %v107 = vsel %vm99, %v77, 0
    %v110 = vsel %vm99, %v78, 0
    %112 = vmatprep.subr.bf16.mxu0 %v92
    %113 = vmatpush1.bf16.msra.mxu0 %v91
    %114 = vmatprep.subr.bf16.mxu0 %v94
    %115 = vmatpush1.bf16.msra.mxu0 %v93
    %116 = vmatprep.subr.bf16.mxu0 0
    %117 = vmatpush1.bf16.msra.mxu0 0
    %118 = vmatprep.subr.bf16.mxu0 0
    %119 = vmatpush1.bf16.msra.mxu0 0
    %120 = vmatprep.subr.bf16.mxu0 0
    %121 = vmatpush1.bf16.msra.mxu0 0
    %122 = vmatprep.subr.bf16.mxu0 0
    %123 = vmatpush1.bf16.msra.mxu0 0
    %124 = vmatprep.subr.bf16.mxu0 0
    %125 = vmatpush1.bf16.msra.mxu0 0
    %126 = vmatprep.subr.bf16.mxu0 0
    %127 = vmatpush1.bf16.msra.mxu0 0
    %128 = vmatprep.subr.bf16.mxu0 0
    %129 = vmatpush1.bf16.msra.mxu0 0
    %130 = vmatprep.subr.bf16.mxu0 0
    %131 = vmatpush1.bf16.msra.mxu0 0
    %132 = vmatprep.subr.bf16.mxu0 0
    %133 = vmatpush1.bf16.msra.mxu0 0
    %134 = vmatprep.subr.bf16.mxu0 0
    %135 = vmatpush1.bf16.msra.mxu0 0
    %136 = vmatprep.subr.bf16.mxu0 0
    %137 = vmatpush1.bf16.msra.mxu0 0
    %138 = vmatprep.subr.bf16.mxu0 0
    %139 = vmatpush1.bf16.msra.mxu0 0
    %140 = vmatprep.subr.bf16.mxu0 0
    %141 = vmatpush1.bf16.msra.mxu0 0
    %142 = vmatprep.subr.bf16.mxu0 0
    %143 = vmatpush1.bf16.msra.mxu0 0
    %144 = vmatprep.mubr.bf16.mxu0 0
    %145 = vmatmul.mubr.bf16.gmra.mrb[0].mxu0 %v101
    %v146 = vpop.f32.mrb[0].mxu0
    %v147 = vadd.f32 %v52, %v146
    %v148 = vpop.f32.mrb[0].mxu0
    %v149 = vadd.f32 %v56, %v148
    %v150 = vpop.f32.mrb[0].mxu0
    %v151 = vadd.f32 %v52, %v150
    %v152 = vpop.f32.mrb[0].mxu0
    %v153 = vadd.f32 %v56, %v152
    %154 = vmatprep.mubr.bf16.mxu0 0
    %155 = vmatmul.mubr.bf16.gmra.mrb[0].mxu0 %v104
    %v156 = vpop.f32.mrb[0].mxu0
    %v157 = vadd.f32 %v52, %v156
    %v158 = vpop.f32.mrb[0].mxu0
    %v159 = vadd.f32 %v56, %v158
    %v160 = vpop.f32.mrb[0].mxu0
    %v161 = vadd.f32 %v52, %v160
    %v162 = vpop.f32.mrb[0].mxu0
    %v163 = vadd.f32 %v56, %v162
    %164 = vmatprep.mubr.bf16.mxu0 0
    %165 = vmatmul.mubr.bf16.gmra.mrb[0].mxu0 %v107
    %v166 = vpop.f32.mrb[0].mxu0
    %v167 = vadd.f32 %v52, %v166
    %v168 = vpop.f32.mrb[0].mxu0
    %v169 = vadd.f32 %v56, %v168
    %v170 = vpop.f32.mrb[0].mxu0
    %v171 = vadd.f32 %v52, %v170
    %v172 = vpop.f32.mrb[0].mxu0
    %v173 = vadd.f32 %v56, %v172
    %174 = vmatprep.mubr.bf16.mxu0 0
    %175 = vmatmul.mubr.bf16.gmra.mrb[0].mxu0 %v110
    %v176 = vpop.f32.mrb[0].mxu0
    %v177 = vadd.f32 %v52, %v176
    %v178 = vpop.f32.mrb[0].mxu0
    %v179 = vadd.f32 %v56, %v178
    %v180 = vpop.f32.mrb[0].mxu0
    %v181 = vadd.f32 %v52, %v180
    %v182 = vpop.f32.mrb[0].mxu0
    %v183 = vadd.f32 %v56, %v182
    %184 = vdwg.mxu0
    %v185 = vtanh.pop %v147
    %v186 = vtanh.pop %v149
    %v187 = vtanh.pop %v151
    %v188 = vtanh.pop %v153
    %v189 = vtanh.pop %v157
    %v190 = vtanh.pop %v159
    %v191 = vtanh.pop %v161
    %v192 = vtanh.pop %v163
    %v193 = vtanh.pop %v167
    %v194 = vtanh.pop %v169
    %v195 = vtanh.pop %v171
    %v196 = vtanh.pop %v173
    %v197 = vtanh.pop %v177
    %v198 = vtanh.pop %v179
    %v199 = vtanh.pop %v181
    %v200 = vtanh.pop %v183
    %v201 = vpack.c.bf16 %v187, %v185
    %v202 = vpack.c.bf16 %v188, %v186
    %v203 = vpack.c.bf16 %v191, %v189
    %v204 = vpack.c.bf16 %v192, %v190
    %v205 = vpack.c.bf16 %v195, %v193
    %v206 = vpack.c.bf16 %v196, %v194
    %v207 = vpack.c.bf16 %v199, %v197
    %v208 = vpack.c.bf16 %v200, %v198
    %v209 = vld [vmem:[#allocation2] sm:$0xf]
    %v210 = vld [vmem:[#allocation2 + $0x4] sm:$0xf]
    %v211 = vld [vmem:[#allocation2 + $0x8] sm:$0xf]
    %v212 = vld [vmem:[#allocation2 + $0xc] sm:$0xf]
    %v213 = vld [vmem:[#allocation2 + $0x10] sm:$0xf]
    %v214 = vld [vmem:[#allocation2 + $0x14] sm:$0xf]
    %v215 = vld [vmem:[#allocation2 + $0x18] sm:$0xf]
    %v216 = vld [vmem:[#allocation2 + $0x1c] sm:$0xf]
    %v217 = vld [vmem:[#allocation2 + $0x20] sm:$0xf]
    %v218 = vld [vmem:[#allocation2 + $0x24] sm:$0xf]
    %v219 = vld [vmem:[#allocation2 + $0x28] sm:$0xf]
    %v220 = vld [vmem:[#allocation2 + $0x2c] sm:$0xf]
    %v221 = vld [vmem:[#allocation2 + $0x30] sm:$0xf]
    %v222 = vld [vmem:[#allocation2 + $0x34] sm:$0xf]
    %v223 = vld [vmem:[#allocation2 + $0x38] sm:$0xf]
    %v224 = vld [vmem:[#allocation2 + $0x3c] sm:$0xf]
    %v225 = vld [vmem:[#allocation2 + $0x40] sm:$0xf]
    %v226 = vld [vmem:[#allocation2 + $0x44] sm:$0xf]
    %v227 = vld [vmem:[#allocation2 + $0x48] sm:$0xf]
    %v228 = vld [vmem:[#allocation2 + $0x4c] sm:$0xf]
    %v229 = vld [vmem:[#allocation2 + $0x50] sm:$0xf]
    %v230 = vld [vmem:[#allocation2 + $0x54] sm:$0xf]
    %v231 = vld [vmem:[#allocation2 + $0x58] sm:$0xf]
    %v232 = vld [vmem:[#allocation2 + $0x5c] sm:$0xf]
    %v233 = vld [vmem:[#allocation2 + $0x60] sm:$0xf]
    %v234 = vld [vmem:[#allocation2 + $0x64] sm:$0xf]
    %v235 = vld [vmem:[#allocation2 + $0x68] sm:$0xf]
    %v236 = vld [vmem:[#allocation2 + $0x6c] sm:$0xf]
    %v237 = vld [vmem:[#allocation2 + $0x70] sm:$0xf]
    %v238 = vld [vmem:[#allocation2 + $0x74] sm:$0xf]
    %v239 = vld [vmem:[#allocation2 + $0x78] sm:$0xf]
    %v240 = vld [vmem:[#allocation2 + $0x7c] sm:$0xf]
    %v241 = vld [vmem:[%s4] sm:$0x1]
    %v243 = vlaneseq
    %v244 = vshrl.u32 %v243, 7
    %v245 = vsub.s32 0, %v244
    %v246 = vrot.slane %v241, %v245
    %v280 = vunpack.c.l.b16 %v209
    %v281 = vunpack.c.l.b16 %v210
    %v282 = vunpack.c.l.b16 %v211
    %v283 = vunpack.c.l.b16 %v212
    %v284 = vunpack.c.l.b16 %v213
    %v285 = vunpack.c.l.b16 %v214
    %v286 = vunpack.c.l.b16 %v215
    %v287 = vunpack.c.l.b16 %v216
    %v288 = vunpack.c.l.b16 %v217
    %v289 = vunpack.c.l.b16 %v218
    %v290 = vunpack.c.l.b16 %v219
    %v291 = vunpack.c.l.b16 %v220
    %v292 = vunpack.c.l.b16 %v221
    %v293 = vunpack.c.l.b16 %v222
    %v294 = vunpack.c.l.b16 %v223
    %v295 = vunpack.c.l.b16 %v224
    %v296 = vunpack.c.l.b16 %v225
    %v297 = vunpack.c.l.b16 %v226
    %v298 = vunpack.c.l.b16 %v227
    %v299 = vunpack.c.l.b16 %v228
    %v300 = vunpack.c.l.b16 %v229
    %v301 = vunpack.c.l.b16 %v230
    %v302 = vunpack.c.l.b16 %v231
    %v303 = vunpack.c.l.b16 %v232
    %v304 = vunpack.c.l.b16 %v233
    %v305 = vunpack.c.l.b16 %v234
    %v306 = vunpack.c.l.b16 %v235
    %v307 = vunpack.c.l.b16 %v236
    %v308 = vunpack.c.l.b16 %v237
    %v309 = vunpack.c.l.b16 %v238
    %v310 = vunpack.c.l.b16 %v239
    %v311 = vunpack.c.l.b16 %v240
    %v312 = vpack.c.b16 %v281, %v280
    %v313 = vpack.c.b16 %v283, %v282
    %v314 = vpack.c.b16 %v285, %v284
    %v315 = vpack.c.b16 %v287, %v286
    %v316 = vpack.c.b16 %v289, %v288
    %v317 = vpack.c.b16 %v291, %v290
    %v318 = vpack.c.b16 %v293, %v292
    %v319 = vpack.c.b16 %v295, %v294
    %v320 = vpack.c.b16 %v297, %v296
    %v321 = vpack.c.b16 %v299, %v298
    %v322 = vpack.c.b16 %v301, %v300
    %v323 = vpack.c.b16 %v303, %v302
    %v324 = vpack.c.b16 %v305, %v304
    %v325 = vpack.c.b16 %v307, %v306
    %v326 = vpack.c.b16 %v309, %v308
    %v327 = vpack.c.b16 %v311, %v310
    %344 = vmatprep.subr.bf16.mxu0 0
    %345 = vmatpush1.bf16.msra.mxu0 %v312
    %346 = vmatprep.subr.bf16.mxu0 0
    %347 = vmatpush1.bf16.msra.mxu0 %v313
    %348 = vmatprep.subr.bf16.mxu0 0
    %349 = vmatpush1.bf16.msra.mxu0 %v314
    %350 = vmatprep.subr.bf16.mxu0 0
    %351 = vmatpush1.bf16.msra.mxu0 %v315
    %352 = vmatprep.subr.bf16.mxu0 0
    %353 = vmatpush1.bf16.msra.mxu0 %v316
    %354 = vmatprep.subr.bf16.mxu0 0
    %355 = vmatpush1.bf16.msra.mxu0 %v317
    %356 = vmatprep.subr.bf16.mxu0 0
    %357 = vmatpush1.bf16.msra.mxu0 %v318
    %358 = vmatprep.subr.bf16.mxu0 0
    %359 = vmatpush1.bf16.msra.mxu0 %v319
    %360 = vmatprep.subr.bf16.mxu0 0
    %361 = vmatpush1.bf16.msra.mxu0 %v320
    %362 = vmatprep.subr.bf16.mxu0 0
    %363 = vmatpush1.bf16.msra.mxu0 %v321
    %364 = vmatprep.subr.bf16.mxu0 0
    %365 = vmatpush1.bf16.msra.mxu0 %v322
    %366 = vmatprep.subr.bf16.mxu0 0
    %367 = vmatpush1.bf16.msra.mxu0 %v323
    %368 = vmatprep.subr.bf16.mxu0 0
    %369 = vmatpush1.bf16.msra.mxu0 %v324
    %370 = vmatprep.subr.bf16.mxu0 0
    %371 = vmatpush1.bf16.msra.mxu0 %v325
    %372 = vmatprep.subr.bf16.mxu0 0
    %373 = vmatpush1.bf16.msra.mxu0 %v326
    %374 = vmatprep.subr.bf16.mxu0 0
    %375 = vmatpush1.bf16.msra.mxu0 %v327
    %376 = vmatprep.mubr.bf16.mxu0 %v202
    %377 = vmatmul.mubr.bf16.gmra.mrb[0].mxu0 %v201
    %v378 = vpop.f32.mrb[0].mxu0
    %v379 = vadd.f32 %v246, %v378
    %v380 = vpop.f32.mrb[0].mxu0
    %v381 = vpop.f32.mrb[0].mxu0
    %v382 = vadd.f32 %v246, %v381
    %v383 = vpop.f32.mrb[0].mxu0
    %384 = vmatprep.mubr.bf16.mxu0 %v204
    %385 = vmatmul.mubr.bf16.gmra.mrb[0].mxu0 %v203
    %v386 = vpop.f32.mrb[0].mxu0
    %v387 = vadd.f32 %v246, %v386
    %v388 = vpop.f32.mrb[0].mxu0
    %v389 = vpop.f32.mrb[0].mxu0
    %v390 = vadd.f32 %v246, %v389
    %v391 = vpop.f32.mrb[0].mxu0
    %392 = vmatprep.mubr.bf16.mxu0 %v206
    %393 = vmatmul.mubr.bf16.gmra.mrb[0].mxu0 %v205
    %v394 = vpop.f32.mrb[0].mxu0
    %v395 = vadd.f32 %v246, %v394
    %v396 = vpop.f32.mrb[0].mxu0
    %v397 = vpop.f32.mrb[0].mxu0
    %v398 = vadd.f32 %v246, %v397
    %v399 = vpop.f32.mrb[0].mxu0
    %400 = vmatprep.mubr.bf16.mxu0 %v208
    %401 = vmatmul.mubr.bf16.gmra.mrb[0].mxu0 %v207
    %v402 = vpop.f32.mrb[0].mxu0
    %v403 = vadd.f32 %v246, %v402
    %v404 = vpop.f32.mrb[0].mxu0
    %v405 = vpop.f32.mrb[0].mxu0
    %v406 = vadd.f32 %v246, %v405
    %v407 = vpop.f32.mrb[0].mxu0
    %408 = vdwg.mxu0
    %vm409 = vcmask 15360
    %410 = vst.msk [vmem:[%s5] sm:$0xff] %vm409, %v379
    %411 = vst.msk [vmem:[%s5 + $0x8] sm:$0xff] %vm409, %v382
    %412 = vst.msk [vmem:[%s5 + $0x10] sm:$0xff] %vm409, %v387
    %413 = vst.msk [vmem:[%s5 + $0x18] sm:$0xff] %vm409, %v390
    %414 = vst.msk [vmem:[%s5 + $0x20] sm:$0xff] %vm409, %v395
    %415 = vst.msk [vmem:[%s5 + $0x28] sm:$0xff] %vm409, %v398
    %416 = vst.msk [vmem:[%s5 + $0x30] sm:$0xff] %vm409, %v403
    %417 = vst.msk [vmem:[%s5 + $0x38] sm:$0xff] %vm409, %v406
    // Predicated region
    $region26: #{tpu_custom_call.1} parent=1 // pred_check
      _
    $region27: #{tpu_custom_call.1} parent=1 // pred_check_branch
      %419 = sbr.rel (0) target = $region29
    $region28: #{tpu_custom_call.1} parent=1 // pred_region
      _
    $region29: #{tpu_custom_call.1} parent=1 // pred_fallthru
      _
    // Predicated region
    $region30: #{tpu_custom_call.1} parent=1 // pred_check
      _
    $region31: #{tpu_custom_call.1} parent=1 // pred_check_branch
      %421 = sbr.rel (0) target = $region33
    $region32: #{tpu_custom_call.1} parent=1 // pred_region
      _
    $region33: #{tpu_custom_call.1} parent=1 // pred_fallthru
      _
    %422 = vsyncpa [#allocation3], 1

</llo_original>
